<compile_context>
chip_gen: v5e
topology: v5e:2x2
jax: 0.10.0
libtpu: 0.0.40
codegen_flags: <defaults>
</compile_context>

<pallas_src>
import functools

import jax
import jax.numpy as jnp
from jax.experimental import pallas as pl
from jax.experimental.pallas import tpu as pltpu


_MIB = 1024 * 1024
# Lane-dense slab width candidates: any multiple of 128, widest first.
_WIDTH_CANDIDATES = tuple(128 * k for k in range(16, 0, -1))
_FALLBACK_WIDTH = 512


def _round_up(x: int, m: int) -> int:
    return ((x + m - 1) // m) * m


def _chip_config():
    """Returns (block_bytes, num_cores, use_core_parallel, bf16_compute_ok)."""
    kind = ""
    try:
        kind = jax.devices()[0].device_kind.lower()
    except Exception:
        pass
    if "v7" in kind:
        # ~3.2 TB/s HBM, 2 TCs, 32 MiB scoped-VMEM default (64 MiB physical):
        # 6 MiB blocks, double-buffered in+out = 24 MiB.
        return 6 * _MIB, 2, True, True
    if "v6" in kind:
        # 4 MiB blocks, double-buffered = 16 MiB (32 MiB scoped default).
        return 4 * _MIB, 1, False, True
    # v5e (16 MiB scoped default) / unknown generation: stay at 2 MiB blocks.
    return 2 * _MIB, 1, False, False


def _gaussian_kernel(x_ref, o_ref, *, mu: float, neg_half_inv_sigma_sq: float,
                     compute_dtype):
    # Elementwise hot path: VPU (sub, mul) + EUP (exp); HBM-bound.
    x = x_ref[...].astype(compute_dtype)
    d = x - mu                                   # python scalars keep compute_dtype
    o_ref[...] = jnp.exp(d * d * neg_half_inv_sigma_sq).astype(o_ref.dtype)


def gaussian_kernel(x: jax.Array, mu: float = 1.0, sigma: float = 1.0) -> jax.Array:
    """exp(-0.5 * (x - mu)^2 / sigma^2) elementwise via a Pallas TPU kernel."""
    orig_shape = x.shape
    in_dtype = x.dtype
    n = int(x.size)

    # Output dtype mirrors floating inputs; integer inputs promote to float32
    # (PyTorch promotes int - float to float).
    out_dtype = in_dtype if jnp.issubdtype(in_dtype, jnp.floating) else jnp.float32
    if n == 0:
        return jnp.zeros(orig_shape, out_dtype)

    block_bytes, num_cores, use_core_parallel, bf16_ok = _chip_config()

    # Compute dtype: f32 for parity with the PyTorch reference, except native
    # bf16 on v6e/v7x where VPU/EUP are bf16-capable (halves EUP pushes).
    compute_dtype = jnp.bfloat16 if (bf16_ok and in_dtype == jnp.bfloat16) else jnp.float32

    itemsize = jnp.dtype(in_dtype).itemsize
    sub = {4: 8, 2: 16, 1: 32}.get(itemsize, 8)   # sublane multiple per dtype width

    # Pick the widest lane-dense width (multiple of 128) dividing n exactly,
    # preferring one that leaves at least a full sublane group of rows.
    width = next((w for w in _WIDTH_CANDIDATES if n % w == 0 and n // w >= sub), None)
    if width is None:
        width = next((w for w in _WIDTH_CANDIDATES if n % w == 0), None)

    flat = x.reshape(-1)
    pad = 0
    if width is None:
        # True last resort: pad only to a lane-width multiple (< 512 elements).
        width = _FALLBACK_WIDTH
        pad = (-n) % width
        flat = jnp.concatenate([flat, jnp.zeros((pad,), dtype=in_dtype)])

    rows = flat.shape[0] // width
    slab = flat.reshape(rows, width)

    # Row tile: ~block_bytes per block, multiple of `sub`; then rebalance so the
    # grid has >= 2 near-equal blocks per TensorCore when rows allow.
    if rows <= sub:
        tile = rows                               # full extent -> single block
    else:
        tile = max(sub, (block_bytes // (width * itemsize)) // sub * sub)
        tile = min(tile, _round_up(rows, sub))
        grid_n = pl.cdiv(rows, tile)
        min_blocks = max(1, min(2 * num_cores, rows // sub))
        blocks = max(grid_n, min_blocks)
        tile = max(sub, _round_up(pl.cdiv(rows, blocks), sub))
        if tile >= rows:
            tile = rows
    grid = (pl.cdiv(rows, tile),)                 # partial last row-block is masked

    kernel = functools.partial(
        _gaussian_kernel,
        mu=float(mu),
        neg_half_inv_sigma_sq=-0.5 / float(sigma) ** 2,
        compute_dtype=compute_dtype,
    )

    def _run(dim_semantics):
        return pl.pallas_call(
            kernel,
            out_shape=jax.ShapeDtypeStruct((rows, width), out_dtype),
            grid_spec=pltpu.PrefetchScalarGridSpec(
                num_scalar_prefetch=0,
                grid=grid,
                in_specs=[pl.BlockSpec((tile, width), lambda i: (i, 0))],
                out_specs=pl.BlockSpec((tile, width), lambda i: (i, 0)),
            ),
            compiler_params=pltpu.CompilerParams(dimension_semantics=dim_semantics),
        )(slab)

    if use_core_parallel and grid[0] >= 2:
        try:
            out = _run((pltpu.CORE_PARALLEL,))    # real dual-TC split on v7x
        except Exception:
            out = _run(("parallel",))
    else:
        out = _run(("parallel",))

    if pad > 0:
        return out.reshape(-1)[:n].reshape(orig_shape)
    return out.reshape(orig_shape)


if __name__ == "__main__":
    key = jax.random.PRNGKey(0)
    # Small NCHW input consistent with the module's usage.
    x = jax.random.normal(key, (2, 4, 16, 16), dtype=jnp.float32)

    mu, sigma = 1.0, 1.0
    y = gaussian_kernel(x, mu=mu, sigma=sigma)
    y = jax.block_until_ready(y)

    # Reference check against plain JAX (mirrors the PyTorch forward).
    y_ref = jnp.exp(-0.5 * jnp.square(x - mu) / (sigma ** 2))
    assert y.shape == x.shape and y.dtype == x.dtype
    assert jnp.allclose(y, y_ref, atol=1e-6, rtol=1e-6)

    print("KERNEL_OK")
</pallas_src>

<mosaic_0001>
module attributes {stable_mosaic.version = 11 : i64} {
  func.func @_gaussian_kernel(%arg0: i32, %arg1: memref<8x256xf32, #tpu.memory_space<vmem>>, %arg2: memref<8x256xf32, #tpu.memory_space<vmem>>) attributes {dimension_semantics = [#tpu.dimension_semantics<parallel>], iteration_bounds = array<i64: 1>, scalar_prefetch = 0 : i64, scratch_operands = 0 : i64, tpu.core_type = #tpu.core_type<tc>, window_params = [{transform_indices = @transform_0, window_bounds = array<i64: 8, 256>}, {transform_indices = @transform_1, window_bounds = array<i64: 8, 256>}]} {
    %c0 = arith.constant 0 : index
    %c0_0 = arith.constant 0 : index
    %0 = vector.load %arg1[%c0, %c0_0] : memref<8x256xf32, #tpu.memory_space<vmem>>, vector<8x256xf32>
    %cst = arith.constant 1.000000e+00 : f32
    %1 = vector.broadcast %cst : f32 to vector<8x256xf32>
    %2 = arith.subf %0, %1 : vector<8x256xf32>
    %3 = arith.mulf %2, %2 : vector<8x256xf32>
    %cst_1 = arith.constant -5.000000e-01 : f32
    %4 = vector.broadcast %cst_1 : f32 to vector<8x256xf32>
    %5 = arith.mulf %3, %4 : vector<8x256xf32>
    %6 = math.exp %5 : vector<8x256xf32>
    %c0_2 = arith.constant 0 : index
    %c0_3 = arith.constant 0 : index
    %7 = vector.load %arg2[%c0_2, %c0_3] : memref<8x256xf32, #tpu.memory_space<vmem>>, vector<8x256xf32>
    tpu.vector_store %arg2[%c0_2, %c0_3], %6 {strides = array<i32>} : memref<8x256xf32, #tpu.memory_space<vmem>>, vector<8x256xf32>,
    return
  }
  func.func @transform_0(%arg0: i32) -> (i32, i32) {
    %c0_i32 = arith.constant 0 : i32
    %c0_i32_0 = arith.constant 0 : i32
    return %arg0, %c0_i32 : i32, i32
  }
  func.func @transform_1(%arg0: i32) -> (i32, i32) {
    %c0_i32 = arith.constant 0 : i32
    %c0_i32_0 = arith.constant 0 : i32
    return %arg0, %c0_i32 : i32, i32
  }
}

</mosaic_0001>

<llo_original>
// kernel: tpu_custom_call.1
$region0: #{tpu_custom_call.1}
  #allocation0 [shape = 'u32[]', space=smem, size = 0x4, offset = 0x4, fixed_abs, tag = 'smem constant byte address 0x4 - core index']
  #allocation1 [shape = 'u32[72,128]{1,0:T(1,128)}', space=vmem, size = 0x9000, scoped, tag = 'internal scratch']
  %s0 = inlined_call_operand.hbm [shape: f32[8,256], index: 0, kind: input, shape index: {}]
  %s1 = inlined_call_operand.hbm [shape: f32[8,256], index: 1, kind: output, shape index: {}]
  %s2 = sld [smem:[#allocation0]]
  $region18: #{tpu_custom_call.1} parent=0
    _
  %s4 = ssub.s32 1, %s2
  %s5 = scalar_select 0, %s4, %s2
  $region1: #{tpu_custom_call.1} parent=0
    #allocation2 [shape = 'u8[8192]{0}', space=vmem, size = 0x2000, scoped, tag = 'input window, operand 0, single buffered']
    #allocation3 [shape = 's32[1]{0}', space=sflag, size = 0x4, scoped, tag = 'scoped memory for tpu_custom_call.1']
    #allocation4 [shape = 's32[1]{0}', space=sflag, size = 0x4, scoped, tag = 'scoped memory for tpu_custom_call.1']
    #allocation5 [shape = 'u8[8192]{0}', space=vmem, size = 0x2000, scoped, tag = 'output window, operand 0, single buffered']
    %6 = vsyncpa [#allocation3], 0
    %7 = vsyncpa [#allocation4], 0
    // Predicated region
    $region2: #{tpu_custom_call.1} parent=1 // pred_check
      _
    $region3: #{tpu_custom_call.1} parent=1 // pred_check_branch
      %9 = sbr.rel (0) target = $region5
    $region4: #{tpu_custom_call.1} parent=1 // pred_region
      %11 = vsyncadd [#allocation3], 0
      %s13 = sshll.u32 %s0, 4
      %s14 = int_to_ptr.hbm [resolvable:$true] %s13
      %s15 = sshll.u32 [#allocation2], 4
      %s16 = int_to_ptr.vmem [resolvable:$true] %s15
      %18 = dma.hbm_to_vmem [thread:$0]  %s14, 256, %s16, [#allocation3]
    $region5: #{tpu_custom_call.1} parent=1 // pred_fallthru
      _
    // Predicated region
    $region6: #{tpu_custom_call.1} parent=1 // pred_check
      _
    $region7: #{tpu_custom_call.1} parent=1 // pred_check_branch
      %20 = sbr.rel (0) target = $region9
    $region8: #{tpu_custom_call.1} parent=1 // pred_region
      %22 = dma.done [#allocation3], 256
    $region9: #{tpu_custom_call.1} parent=1 // pred_fallthru
      _
    %v23 = vld [vmem:[#allocation2] sm:$0xff]
    %v24 = vld [vmem:[#allocation2 + $0x8] sm:$0xff]
    %v25 = vsub.f32 %v23, 1.0
    %v26 = vsub.f32 %v24, 1.0
    %v27 = vmul.f32 %v25, %v25
    %v28 = vmul.f32 %v26, %v26
    %v29 = vmul.f32 %v27, -0.5
    %v30 = vmul.f32 %v28, -0.5
    %v31 = vmul.f32 %v29, 1.442695
    %v32 = vpow.pop %v31
    %v33 = vmul.f32 %v30, 1.442695
    %v34 = vpow.pop %v33
    %35 = vst [vmem:[#allocation5] sm:$0xff] %v32
    %36 = vst [vmem:[#allocation5 + $0x8] sm:$0xff] %v34
    // Predicated region
    $region10: #{tpu_custom_call.1} parent=1 // pred_check
      _
    $region11: #{tpu_custom_call.1} parent=1 // pred_check_branch
      %38 = sbr.rel (0) target = $region13
    $region12: #{tpu_custom_call.1} parent=1 // pred_region
      %40 = vsyncadd [#allocation4], 0
      %s42 = sshll.u32 [#allocation5], 4
      %s43 = int_to_ptr.vmem [resolvable:$true] %s42
      %s44 = sshll.u32 %s1, 4
      %s45 = int_to_ptr.hbm [resolvable:$true] %s44
      %47 = dma.vmem_to_hbm [thread:$0]  %s43, 256, %s45, [#allocation4]
    $region13: #{tpu_custom_call.1} parent=1 // pred_fallthru
      _
    // Predicated region
    $region14: #{tpu_custom_call.1} parent=1 // pred_check
      _
    $region15: #{tpu_custom_call.1} parent=1 // pred_check_branch
      %49 = sbr.rel (0) target = $region17
    $region16: #{tpu_custom_call.1} parent=1 // pred_region
      %51 = dma.done [#allocation4], 256
    $region17: #{tpu_custom_call.1} parent=1 // pred_fallthru
      _
    %52 = vsyncpa [#allocation3], 1
    %53 = vsyncpa [#allocation4], 1

</llo_original>
